<compile_context>
chip_gen: v5e
topology: v5e:2x2
jax: 0.10.0
libtpu: 0.0.40
codegen_flags: <defaults>
</compile_context>

<pallas_src>
import jax
import jax.numpy as jnp
from jax.experimental import pallas as pl
from jax.experimental.pallas import tpu as pltpu


def _round_up(x, m):
    return ((x + m - 1) // m) * m


def _conv1d_k3_relu_kernel(x_ref, w_ref, b_ref, o_ref):
    # x_ref: (L_pad + 2, Cin)   zero-padded sequence for this type (resident, f32)
    # w_ref: (3*Cin, Cout_pad)  tap-major flattened weights (f32 or bf16)
    # b_ref: (1, Cout_pad)      bias (f32)
    # o_ref: (tile_l, Cout_pad) output tile (f32)
    tl = o_ref.shape[0]
    start = pl.multiple_of(pl.program_id(1) * tl, tl)
    # im2col LHS: padded rows start, start+1, start+2 concatenated on the lane
    # axis -> one MXU matmul with K = 3*Cin (instead of 3 dots + 2 VPU adds).
    lhs = jnp.concatenate(
        [x_ref[pl.ds(start, tl), :],
         x_ref[pl.ds(start + 1, tl), :],
         x_ref[pl.ds(start + 2, tl), :]],
        axis=-1,
    ).astype(w_ref.dtype)
    acc = jnp.dot(lhs, w_ref[...], preferred_element_type=jnp.float32)
    acc = acc + b_ref[...]                       # f32 epilogue (v5e-safe)
    o_ref[...] = jnp.maximum(acc, 0.0).astype(o_ref.dtype)


def conv_trans_batched(seqs, w3_list, b_list, *,
                       compute_dtype=jnp.float32, max_tile_l=512):
    """Batched relu(Conv1d(k=3, pad=1)) over a list of sequences.

    seqs    : list of (L_j, Cin) f32 arrays
    w3_list : list of (3, Cin, Cout) tap-major weights (== torch weight.transpose)
    b_list  : list of (Cout,) biases
    returns : list of (L_j, Cout) f32 arrays
    """
    T = len(seqs)
    Cin = seqs[0].shape[1]
    Cout = w3_list[0].shape[-1]
    lengths = [int(s.shape[0]) for s in seqs]
    max_l = max(lengths)

    # Big tiles: for small L the whole sequence is a single grid step.
    if max_l <= max_tile_l:
        L_pad = _round_up(max_l, 16)           # multiple of 16 (bf16 sublane pack)
        tile_l = L_pad
    else:
        tile_l = max_tile_l
        L_pad = _round_up(max_l, tile_l)
    Cout_pad = _round_up(Cout, 128)            # lane-dense output stores
    n_l = L_pad // tile_l

    # Pack sequences: one zero halo row on each side, trailing zeros to L_pad.
    xp = jnp.zeros((T, L_pad + 2, Cin), jnp.float32)
    for j, s in enumerate(seqs):
        xp = xp.at[j, 1:lengths[j] + 1, :].set(s.astype(jnp.float32))

    # Weights: tap-major (3, Cin, Cout) -> (3*Cin, Cout), zero-pad Cout to 128-mult.
    W = jnp.stack([w.reshape(3 * Cin, Cout) for w in w3_list])     # (T, 3*Cin, Cout)
    W = jnp.pad(W, ((0, 0), (0, 0), (0, Cout_pad - Cout))).astype(compute_dtype)
    B = jnp.stack([b.reshape(1, Cout) for b in b_list])            # (T, 1, Cout)
    B = jnp.pad(B, ((0, 0), (0, 0), (0, Cout_pad - Cout))).astype(jnp.float32)

    # Explicit VMEM budget (double-buffered blocks + headroom), clamped to be
    # safe on v7x (64 MiB physical) and below default scoped on v5e/v6e.
    vmem_need = 4 * ((L_pad + 2) * Cin + 3 * Cin * Cout_pad
                     + Cout_pad + tile_l * Cout_pad)
    vmem_limit = int(min(max(4 * vmem_need, 32 * 1024 * 1024), 64 * 1024 * 1024))

    out = pl.pallas_call(
        _conv1d_k3_relu_kernel,
        out_shape=jax.ShapeDtypeStruct((T, L_pad, Cout_pad), jnp.float32),
        grid_spec=pltpu.PrefetchScalarGridSpec(
            num_scalar_prefetch=0,
            grid=(T, n_l),
            in_specs=[
                # whole padded sequence of the current type, resident across L steps
                pl.BlockSpec((None, L_pad + 2, Cin), lambda t, i: (t, 0, 0)),
                pl.BlockSpec((None, 3 * Cin, Cout_pad), lambda t, i: (t, 0, 0)),
                pl.BlockSpec((None, 1, Cout_pad), lambda t, i: (t, 0, 0)),
            ],
            out_specs=pl.BlockSpec((None, tile_l, Cout_pad),
                                   lambda t, i: (t, i, 0)),
        ),
        compiler_params=pltpu.CompilerParams(
            dimension_semantics=("parallel", "parallel"),
            vmem_limit_bytes=vmem_limit),
    )(xp, W, B)

    return [out[j, :lengths[j], :Cout] for j in range(T)]


class ConvTrans:
    """JAX/Pallas re-implementation of Conv_Trans.

    Weights are stored tap-major (K, Cin, Cout) == transpose of torch's
    (Cout, Cin, K). All dict entries are processed in ONE fused pallas_call.
    """

    def __init__(self, in_dim, out_dim, ntype_list, rel=False, key=None,
                 compute_dtype=jnp.float32):
        self.rel = rel
        self.ker_dim = 3
        self.in_dim = in_dim
        self.out_dim = out_dim
        self.compute_dtype = compute_dtype
        if key is None:
            key = jax.random.PRNGKey(42)
        bound = 1.0 / float((in_dim * self.ker_dim) ** 0.5)

        def init_one(k):
            kw, kb = jax.random.split(k)
            w = jax.random.uniform(kw, (self.ker_dim, in_dim, out_dim),
                                   jnp.float32, -bound, bound)
            b = jax.random.uniform(kb, (out_dim,), jnp.float32, -bound, bound)
            return w, b

        if self.rel:
            keys = jax.random.split(key, len(ntype_list))
            self.params = {t: init_one(k) for t, k in zip(ntype_list, keys)}
        else:
            self.params = init_one(key)

    def __call__(self, data):
        types = list(data.keys())
        seqs = [data[t] for t in types]
        if self.rel:
            w_list = [self.params[t][0] for t in types]
            b_list = [self.params[t][1] for t in types]
        else:
            w_list = [self.params[0]] * len(types)
            b_list = [self.params[1]] * len(types)
        outs = conv_trans_batched(seqs, w_list, b_list,
                                  compute_dtype=self.compute_dtype)
        return dict(zip(types, outs))


def _ref_conv1d_k3_relu(x, w3, b):
    """Pure-JAX reference (matches torch Conv1d k=3, pad=1 + ReLU)."""
    L = x.shape[0]
    xp = jnp.pad(x, ((1, 1), (0, 0)))
    y = xp[0:L] @ w3[0] + xp[1:L + 1] @ w3[1] + xp[2:L + 2] @ w3[2] + b[None, :]
    return jnp.maximum(y, 0.0)


if __name__ == "__main__":
    in_dim, out_dim = 16, 32
    ntype_list = ["a", "b"]

    key = jax.random.PRNGKey(0)
    ka, kb = jax.random.split(key)
    data = {
        "a": jax.random.normal(ka, (8, in_dim), jnp.float32),
        "b": jax.random.normal(kb, (12, in_dim), jnp.float32),  # ragged lengths
    }

    # 1) rel=True, f32 compute path — strict correctness check.
    model = ConvTrans(in_dim, out_dim, ntype_list, rel=True,
                      key=jax.random.PRNGKey(42))
    out = model(data)
    out = jax.tree_util.tree_map(jax.block_until_ready, out)
    for j in data:
        w, b = model.params[j]
        ref = _ref_conv1d_k3_relu(data[j], w, b)
        assert out[j].shape == (data[j].shape[0], out_dim)
        assert jnp.allclose(out[j], ref, atol=1e-5, rtol=1e-5), j

    # 2) rel=False (shared conv), still a single fused launch.
    model_shared = ConvTrans(in_dim, out_dim, ntype_list, rel=False,
                             key=jax.random.PRNGKey(7))
    out_s = model_shared(data)
    out_s = jax.tree_util.tree_map(jax.block_until_ready, out_s)
    w_s, b_s = model_shared.params
    for j in data:
        ref = _ref_conv1d_k3_relu(data[j], w_s, b_s)
        assert jnp.allclose(out_s[j], ref, atol=1e-5, rtol=1e-5), j

    # 3) bf16 MXU fast path (v6e/v7x) — looser tolerance, f32 epilogue.
    model_bf16 = ConvTrans(in_dim, out_dim, ntype_list, rel=True,
                           key=jax.random.PRNGKey(42),
                           compute_dtype=jnp.bfloat16)
    out_bf = model_bf16(data)
    out_bf = jax.tree_util.tree_map(jax.block_until_ready, out_bf)
    for j in data:
        w, b = model_bf16.params[j]
        ref = _ref_conv1d_k3_relu(data[j], w, b)
        assert jnp.allclose(out_bf[j], ref, atol=5e-2, rtol=5e-2), j

    print("KERNEL_OK")
</pallas_src>

<mosaic_0001>
module attributes {stable_mosaic.version = 11 : i64} {
  func.func @_conv1d_k3_relu_kernel(%arg0: i32, %arg1: i32, %arg2: memref<1x18x16xf32, #tpu.memory_space<vmem>>, %arg3: memref<1x48x128xf32, #tpu.memory_space<vmem>>, %arg4: memref<1x1x128xf32, #tpu.memory_space<vmem>>, %arg5: memref<1x16x128xf32, #tpu.memory_space<vmem>>) attributes {dimension_semantics = [#tpu.dimension_semantics<parallel>, #tpu.dimension_semantics<parallel>], iteration_bounds = array<i64: 2, 1>, scalar_prefetch = 0 : i64, scratch_operands = 0 : i64, tpu.core_type = #tpu.core_type<tc>, window_params = [{transform_indices = @transform_0, window_bounds = array<i64: 1, 18, 16>}, {transform_indices = @transform_1, window_bounds = array<i64: 1, 48, 128>}, {transform_indices = @transform_2, window_bounds = array<i64: 1, 1, 128>}, {transform_indices = @transform_3, window_bounds = array<i64: 1, 16, 128>}]} {
    %c16_i32 = arith.constant 16 : i32
    %0 = arith.muli %arg1, %c16_i32 : i32
    %1 = tpu.assume_multiple %0, 16 : i32
    %c0 = arith.constant 0 : index
    %2 = arith.index_cast %1 : i32 to index
    %c0_0 = arith.constant 0 : index
    %3 = vector.load %arg2[%c0, %2, %c0_0] : memref<1x18x16xf32, #tpu.memory_space<vmem>>, vector<1x16x16xf32>
    %4 = vector.shape_cast %3 : vector<1x16x16xf32> to vector<16x16xf32>
    %c1_i32 = arith.constant 1 : i32
    %5 = arith.addi %1, %c1_i32 : i32
    %c0_1 = arith.constant 0 : index
    %6 = arith.index_cast %5 : i32 to index
    %c0_2 = arith.constant 0 : index
    %7 = vector.load %arg2[%c0_1, %6, %c0_2] : memref<1x18x16xf32, #tpu.memory_space<vmem>>, vector<1x16x16xf32>
    %8 = vector.shape_cast %7 : vector<1x16x16xf32> to vector<16x16xf32>
    %c2_i32 = arith.constant 2 : i32
    %9 = arith.addi %1, %c2_i32 : i32
    %c0_3 = arith.constant 0 : index
    %10 = arith.index_cast %9 : i32 to index
    %c0_4 = arith.constant 0 : index
    %11 = vector.load %arg2[%c0_3, %10, %c0_4] : memref<1x18x16xf32, #tpu.memory_space<vmem>>, vector<1x16x16xf32>
    %12 = vector.shape_cast %11 : vector<1x16x16xf32> to vector<16x16xf32>
    %13 = tpu.concatenate %4, %8, %12 in 1 : vector<16x16xf32>, vector<16x16xf32>, vector<16x16xf32> -> vector<16x48xf32>
    %c0_5 = arith.constant 0 : index
    %c0_6 = arith.constant 0 : index
    %c0_7 = arith.constant 0 : index
    %14 = vector.load %arg3[%c0_5, %c0_6, %c0_7] : memref<1x48x128xf32, #tpu.memory_space<vmem>>, vector<1x48x128xf32>
    %15 = vector.shape_cast %14 : vector<1x48x128xf32> to vector<48x128xf32>
    %cst = arith.constant dense<0.000000e+00> : vector<16x128xf32>
    %16 = tpu.matmul %13, %15, %cst {dimension_numbers = #tpu.dot_dimension_numbers<[1], [0], [0], [1], [0, 0, 1, 1], [], []>} : vector<16x48xf32>, vector<48x128xf32>, vector<16x128xf32> -> vector<16x128xf32>
    %c0_8 = arith.constant 0 : index
    %c0_9 = arith.constant 0 : index
    %c0_10 = arith.constant 0 : index
    %17 = vector.load %arg4[%c0_8, %c0_9, %c0_10] : memref<1x1x128xf32, #tpu.memory_space<vmem>>, vector<1x1x128xf32>
    %18 = vector.shape_cast %17 : vector<1x1x128xf32> to vector<1x128xf32>
    %19 = vector.broadcast %18 : vector<1x128xf32> to vector<16x128xf32>
    %20 = arith.addf %16, %19 : vector<16x128xf32>
    %cst_11 = arith.constant 0.000000e+00 : f32
    %21 = vector.broadcast %cst_11 : f32 to vector<16x128xf32>
    %22 = arith.maximumf %20, %21 : vector<16x128xf32>
    %c0_12 = arith.constant 0 : index
    %c0_13 = arith.constant 0 : index
    %c0_14 = arith.constant 0 : index
    %23 = vector.load %arg5[%c0_12, %c0_13, %c0_14] : memref<1x16x128xf32, #tpu.memory_space<vmem>>, vector<1x16x128xf32>
    %24 = vector.shape_cast %23 : vector<1x16x128xf32> to vector<16x128xf32>
    %25 = vector.shape_cast %22 : vector<16x128xf32> to vector<1x16x128xf32>
    tpu.vector_store %arg5[%c0_12, %c0_13, %c0_14], %25 {strides = array<i32>} : memref<1x16x128xf32, #tpu.memory_space<vmem>>, vector<1x16x128xf32>,
    return
  }
  func.func @transform_0(%arg0: i32, %arg1: i32) -> (i32, i32, i32) {
    %c0_i32 = arith.constant 0 : i32
    %c0_i32_0 = arith.constant 0 : i32
    %c0_i32_1 = arith.constant 0 : i32
    return %arg0, %c0_i32, %c0_i32_0 : i32, i32, i32
  }
  func.func @transform_1(%arg0: i32, %arg1: i32) -> (i32, i32, i32) {
    %c0_i32 = arith.constant 0 : i32
    %c0_i32_0 = arith.constant 0 : i32
    %c0_i32_1 = arith.constant 0 : i32
    return %arg0, %c0_i32, %c0_i32_0 : i32, i32, i32
  }
  func.func @transform_2(%arg0: i32, %arg1: i32) -> (i32, i32, i32) {
    %c0_i32 = arith.constant 0 : i32
    %c0_i32_0 = arith.constant 0 : i32
    %c0_i32_1 = arith.constant 0 : i32
    return %arg0, %c0_i32, %c0_i32_0 : i32, i32, i32
  }
  func.func @transform_3(%arg0: i32, %arg1: i32) -> (i32, i32, i32) {
    %c0_i32 = arith.constant 0 : i32
    %c0_i32_0 = arith.constant 0 : i32
    return %arg0, %arg1, %c0_i32 : i32, i32, i32
  }
}

</mosaic_0001>

<llo_original>
// kernel: tpu_custom_call.1
$region0: #{tpu_custom_call.1}
  #allocation0 [shape = 'u32[]', space=smem, size = 0x4, offset = 0x4, fixed_abs, tag = 'smem constant byte address 0x4 - core index']
  #allocation1 [shape = 'u32[72,128]{1,0:T(1,128)}', space=vmem, size = 0x9000, scoped, tag = 'internal scratch']
  %s0 = inlined_call_operand.vmem [shape: f32[2,18,16], index: 0, kind: input, shape index: {}]
  %s1 = inlined_call_operand.hbm [shape: f32[2,48,128], index: 1, kind: input, shape index: {}]
  %s2 = inlined_call_operand.vmem [shape: f32[2,1,128], index: 2, kind: input, shape index: {}]
  %s3 = inlined_call_operand.hbm [shape: f32[2,16,128], index: 3, kind: output, shape index: {}]
  %s4 = sld [smem:[#allocation0]]
  $region49: #{tpu_custom_call.1} parent=0
    _
  %s6 = ssub.s32 1, %s4
  %s7 = scalar_select 0, %s6, %s4
  $region1: #{tpu_custom_call.1} parent=0
    #allocation2 [shape = 'u8[49152]{0}', space=vmem, size = 0xc000, scoped, tag = 'input window, operand 1']
    #allocation3 [shape = 's32[2]{0}', space=sflag, size = 0x8, scoped, tag = 'scoped memory for tpu_custom_call.1']
    #allocation4 [shape = 's32[2]{0}', space=sflag, size = 0x8, scoped, tag = 'scoped memory for tpu_custom_call.1']
    #allocation5 [shape = 'u8[16384]{0}', space=vmem, size = 0x4000, scoped, tag = 'output window, operand 0']
    %8 = vsyncpa [#allocation3], 0
    %s9 = scalar_lea.sflag [#allocation3], 1
    %10 = vsyncpa %s9, 0
    %11 = vsyncpa [#allocation4], 0
    %s12 = scalar_lea.sflag [#allocation4], 1
    %13 = vsyncpa %s12, 0
    loop: start=0, step=1, limit=4
    $region2: #{tpu_custom_call.1} parent=1 // loop_pre_header
      _
    $region3: #{tpu_custom_call.1} parent=1 // loop_header
      %s15 = sphi 0, %s19
      %p16 = scmp.ge.s32.totalorder %s15, 4
      %s22 = sphi 0, %s34
      %s23 = sphi 0, %s30
      %s24 = sphi 0, %s22
      %s25 = sphi 0, %s23
      %s26 = sphi 0, %s24
      %s27 = sphi 0, %s25
      %s37 = sphi 0, %s39
      %s40 = sphi 0, %s37
      %s41 = sphi 0, %s40
      %s57 = sphi 0, %s41
      %s63 = sphi 0, %s65
      %s66 = sphi 0, %s63
      %s67 = sphi 0, %s66
      %s83 = sphi 0, %s67
      %s89 = sphi 0, %s91
      %s92 = sphi 0, %s89
      %s93 = sphi 0, %s92
      %s109 = sphi 0, %s93
      %s117 = sphi 0, %s119
      %s120 = sphi 0, %s117
      %s121 = sphi 0, %s120
      %s137 = sphi 0, %s121
    $region4: #{tpu_custom_call.1} parent=1 // loop_header_branch
      %18 = sbr.rel (%p16) target = $region8
    $region5: #{tpu_custom_call.1} parent=1 // loop_body
      %s20 = ssub.s32 %s15, 1
      %s21 = ssub.s32 %s15, 2
      %s28 = sadd.s32 1, %s23
      %p29 = scmp.ge.s32.totalorder %s28, 1
      %s30 = scalar_select %p29, 0, %s28
      %s31 = sadd.s32 1, %s22
      %s32 = scalar_select %p29, %s31, %s22
      %p33 = scmp.ge.s32.totalorder %s32, 2
      %s34 = scalar_select %p33, 0, %s32
      %s35 = ssub.s32 %s22, %s34
      %p36 = scmp.eq.s32.totalorder %s35, 0
      %s38 = sadd.s32 %s37, 1
      %s39 = scalar_select %p36, %s37, %s38
      %p42 = pneg %p36
      %p43 = scmp.eq.s32.totalorder %s15, 1
      %p44 = por %p42, %p43
      %p45 = scmp.ne.s32.totalorder %s37, %s40
      %p46 = scmp.eq.s32.totalorder %s15, 0
      %p47 = por %p45, %p46
      %p48 = scmp.ne.s32.totalorder %s37, %s40
      %p49 = scmp.eq.s32.totalorder %s20, 1
      %p50 = por %p48, %p49
      %p51 = scmp.ne.s32.totalorder %s40, %s41
      %p52 = scmp.eq.s32.totalorder %s20, 0
      %p53 = por %p51, %p52
      %p54 = scmp.ne.s32.totalorder %s40, %s41
      %p55 = scmp.eq.s32.totalorder %s21, 1
      %p56 = por %p54, %p55
      %p58 = scmp.ne.s32.totalorder %s41, %s57
      %p59 = scmp.eq.s32.totalorder %s21, 0
      %p60 = por %p58, %p59
      %s61 = ssub.s32 %s22, %s34
      %p62 = scmp.eq.s32.totalorder %s61, 0
      %s64 = sadd.s32 %s63, 1
      %s65 = scalar_select %p62, %s63, %s64
      %p68 = pneg %p62
      %p69 = scmp.eq.s32.totalorder %s15, 1
      %p70 = por %p68, %p69
      %p71 = scmp.ne.s32.totalorder %s63, %s66
      %p72 = scmp.eq.s32.totalorder %s15, 0
      %p73 = por %p71, %p72
      %p74 = scmp.ne.s32.totalorder %s63, %s66
      %p75 = scmp.eq.s32.totalorder %s20, 1
      %p76 = por %p74, %p75
      %p77 = scmp.ne.s32.totalorder %s66, %s67
      %p78 = scmp.eq.s32.totalorder %s20, 0
      %p79 = por %p77, %p78
      %p80 = scmp.ne.s32.totalorder %s66, %s67
      %p81 = scmp.eq.s32.totalorder %s21, 1
      %p82 = por %p80, %p81
      %p84 = scmp.ne.s32.totalorder %s67, %s83
      %p85 = scmp.eq.s32.totalorder %s21, 0
      %p86 = por %p84, %p85
      %s87 = ssub.s32 %s22, %s34
      %p88 = scmp.eq.s32.totalorder %s87, 0
      %s90 = sadd.s32 %s89, 1
      %s91 = scalar_select %p88, %s89, %s90
      %p94 = pneg %p88
      %p95 = scmp.eq.s32.totalorder %s15, 1
      %p96 = por %p94, %p95
      %p97 = scmp.ne.s32.totalorder %s89, %s92
      %p98 = scmp.eq.s32.totalorder %s15, 0
      %p99 = por %p97, %p98
      %p100 = scmp.ne.s32.totalorder %s89, %s92
      %p101 = scmp.eq.s32.totalorder %s20, 1
      %p102 = por %p100, %p101
      %p103 = scmp.ne.s32.totalorder %s92, %s93
      %p104 = scmp.eq.s32.totalorder %s20, 0
      %p105 = por %p103, %p104
      %p106 = scmp.ne.s32.totalorder %s92, %s93
      %p107 = scmp.eq.s32.totalorder %s21, 1
      %p108 = por %p106, %p107
      %p110 = scmp.ne.s32.totalorder %s93, %s109
      %p111 = scmp.eq.s32.totalorder %s21, 0
      %p112 = por %p110, %p111
      %s113 = ssub.s32 %s22, %s34
      %s114 = ssub.s32 %s23, %s30
      %s115 = sor.u32 %s113, %s114
      %p116 = scmp.eq.s32.totalorder %s115, 0
      %s118 = sadd.s32 %s117, 1
      %s119 = scalar_select %p116, %s117, %s118
      %p122 = pneg %p116
      %p123 = scmp.eq.s32.totalorder %s15, 1
      %p124 = por %p122, %p123
      %p125 = scmp.ne.s32.totalorder %s117, %s120
      %p126 = scmp.eq.s32.totalorder %s15, 0
      %p127 = por %p125, %p126
      %p128 = scmp.ne.s32.totalorder %s117, %s120
      %p129 = scmp.eq.s32.totalorder %s20, 1
      %p130 = por %p128, %p129
      %p131 = scmp.ne.s32.totalorder %s120, %s121
      %p132 = scmp.eq.s32.totalorder %s20, 0
      %p133 = por %p131, %p132
      %p134 = scmp.ne.s32.totalorder %s120, %s121
      %p135 = scmp.eq.s32.totalorder %s21, 1
      %p136 = por %p134, %p135
      %p138 = scmp.ne.s32.totalorder %s121, %s137
      %p139 = scmp.eq.s32.totalorder %s21, 0
      %p140 = por %p138, %p139
      %p141 = scmp.le.s32.totalorder 1, %s15
      %p142 = scmp.lt.s32.totalorder %s15, 3
      %p143 = pnand %p141, %p142
      %p144 = pneg %p143
      // Predicated region
      $region9: #{tpu_custom_call.1} parent=5 // pred_check
        _
      $region10: #{tpu_custom_call.1} parent=5 // pred_check_branch
        %146 = sbr.rel (%p143) target = $region12
      $region11: #{tpu_custom_call.1} parent=5 // pred_region
        %s147 = ssub.s32 %s15, 1
      $region12: #{tpu_custom_call.1} parent=5 // pred_fallthru
        _
      %p148 = scmp.lt.s32.totalorder %s15, 2
      // Predicated region
      $region13: #{tpu_custom_call.1} parent=5 // pred_check
        %p149 = pneg %p148
      $region14: #{tpu_custom_call.1} parent=5 // pred_check_branch
        %151 = sbr.rel (%p149) target = $region16
      $region15: #{tpu_custom_call.1} parent=5 // pred_region
        // Predicated region
        $region17: #{tpu_custom_call.1} parent=15 // pred_check
          %p152 = pneg %p47
        $region18: #{tpu_custom_call.1} parent=15 // pred_check_branch
          %154 = sbr.rel (%p152) target = $region20
        $region19: #{tpu_custom_call.1} parent=15 // pred_region
          %p155 = scmp.lt.s32.totalorder %s22, 1
          %s156 = scalar_select %p155, %s22, 1
          %s157 = smul.addr %s156, 3
          %s158 = smul.addr %s157, 8
          %s159 = scalar_lea.vmem %s0, %s158
        $region20: #{tpu_custom_call.1} parent=15 // pred_fallthru
          _
        // Predicated region
        $region21: #{tpu_custom_call.1} parent=15 // pred_check
          %p160 = pneg %p73
        $region22: #{tpu_custom_call.1} parent=15 // pred_check_branch
          %162 = sbr.rel (%p160) target = $region24
        $region23: #{tpu_custom_call.1} parent=15 // pred_region
          %s163 = sand.u32 %s63, 1
          %s164 = scalar_lea.sflag [#allocation3], %s163
          %s165 = sand.u32 %s63, 1
          %s166 = smul.addr %s165, 48
          %s167 = scalar_lea.vmem [#allocation2], %s166
          %169 = vsyncadd %s164, 0
          %s170 = smul.addr %s22, 6
          %s171 = smul.addr %s170, 8
          %s172 = scalar_lea.hbm %s1, %s171
          %s173 = sshll.u32 %s172, 4
          %s174 = int_to_ptr.hbm [resolvable:$true] %s173
          %s175 = sshll.u32 %s167, 4
          %s176 = int_to_ptr.vmem [resolvable:$true] %s175
          %181 = dma.hbm_to_vmem [thread:$0]  %s174, 768, %s176, %s164, 128, 128, 8
        $region24: #{tpu_custom_call.1} parent=15 // pred_fallthru
          _
        // Predicated region
        $region25: #{tpu_custom_call.1} parent=15 // pred_check
          %p182 = pneg %p99
        $region26: #{tpu_custom_call.1} parent=15 // pred_check_branch
          %184 = sbr.rel (%p182) target = $region28
        $region27: #{tpu_custom_call.1} parent=15 // pred_region
          %p185 = scmp.lt.s32.totalorder %s22, 1
          %s186 = scalar_select %p185, %s22, 1
          %s187 = scalar_lea.vmem %s2, %s186
        $region28: #{tpu_custom_call.1} parent=15 // pred_fallthru
          _
      $region16: #{tpu_custom_call.1} parent=5 // pred_fallthru
        _
      %p188 = scmp.le.s32.totalorder 1, %s15
      %p189 = scmp.lt.s32.totalorder %s15, 3
      %p190 = pnand %p188, %p189
      %p191 = pneg %p190
      // Predicated region
      $region29: #{tpu_custom_call.1} parent=5 // pred_check
        _
      $region30: #{tpu_custom_call.1} parent=5 // pred_check_branch
        %193 = sbr.rel (%p190) target = $region32
      $region31: #{tpu_custom_call.1} parent=5 // pred_region
        %s194 = ssub.s32 %s15, 1
        %s195 = sand.u32 %s66, 1
        %s196 = scalar_lea.sflag [#allocation3], %s195
        %s197 = sand.u32 %s66, 1
        %s198 = smul.addr %s197, 48
        %s199 = scalar_lea.vmem [#allocation2], %s198
        // Predicated region
        $region33: #{tpu_custom_call.1} parent=31 // pred_check
          %p200 = pneg %p79
        $region34: #{tpu_custom_call.1} parent=31 // pred_check_branch
          %202 = sbr.rel (%p200) target = $region36
        $region35: #{tpu_custom_call.1} parent=31 // pred_region
          %204 = dma.done %s196, 768
        $region36: #{tpu_custom_call.1} parent=31 // pred_fallthru
          _
        %p205 = scmp.lt.s32.totalorder %s24, 1
        %s206 = scalar_select %p205, %s24, 1
        %s207 = smul.addr %s206, 3
        %s208 = smul.addr %s207, 8
        %s209 = scalar_lea.vmem %s0, %s208
        %p210 = pneg %p53
        %p211 = pneg %p50
        %s212 = sand.u32 %s66, 1
        %s213 = scalar_lea.sflag [#allocation3], %s212
        %s214 = sand.u32 %s66, 1
        %s215 = smul.addr %s214, 48
        %s216 = scalar_lea.vmem [#allocation2], %s215
        %p217 = pneg %p79
        %p218 = pneg %p76
        %p219 = scmp.lt.s32.totalorder %s24, 1
        %s220 = scalar_select %p219, %s24, 1
        %s221 = scalar_lea.vmem %s2, %s220
        %p222 = pneg %p105
        %p223 = pneg %p102
        %p224 = pneg %p133
        %p225 = pneg %p130
        %s226 = sand.u32 %s120, 1
        %s227 = scalar_lea.sflag [#allocation4], %s226
        %s228 = sand.u32 %s120, 1
        %s229 = smul.addr %s228, 16
        %s230 = scalar_lea.vmem [#allocation5], %s229
        %p231 = scmp.lt.s32.totalorder %s24, 1
        %s232 = scalar_select %p231, %s24, 1
        %s233 = smul.addr %s232, 3
        %s234 = smul.addr %s233, 8
        %s235 = scalar_lea.vmem %s0, %s234
        %p236 = scmp.lt.s32.totalorder %s24, 1
        %s237 = scalar_select %p236, %s24, 1
        %s238 = scalar_lea.vmem %s2, %s237
        %s239 = smul.u32 2, %s25
        %s240 = smul.u32 %s25, 16
        %s241 = scalar_lea.vmem %s235, %s240
        %v242 = vld [vmem:[%s241] sm:$0xff]
        %v243 = vld [vmem:[%s241 + $0x8] sm:$0xff]
        %s244 = sadd.s32 %s240, 1
        %s245 = scalar_lea.vmem %s235, %s244
        %v246 = vld [vmem:[%s245] sm:$0xff]
        %v247 = vld [vmem:[%s245 + $0x8] sm:$0xff]
        %s248 = sadd.s32 %s240, 2
        %s249 = scalar_lea.vmem %s235, %s248
        %v250 = vld [vmem:[%s249] sm:$0xff]
        %v251 = vld [vmem:[%s249 + $0x8] sm:$0xff]
        %254 = vrot.lane.b32.xlu0 %v246, 16
        %v255 = vpop.permute.xlu0 %254
        %256 = vrot.lane.b32.xlu0 %v247, 16
        %v257 = vpop.permute.xlu0 %256
        %262 = vrot.lane.b32.xlu0 %v250, 32
        %v263 = vpop.permute.xlu0 %262
        %264 = vrot.lane.b32.xlu0 %v251, 32
        %v265 = vpop.permute.xlu0 %264
        %vm268 = vcmask 130048
        %v269 = vsel %vm268, %v242, %v255
        %v270 = vsel %vm268, %v243, %v257
        %vm271 = vcmask 261120
        %v272 = vsel %vm271, %v269, %v263
        %v273 = vsel %vm271, %v270, %v265
        %v274 = vld [vmem:[%s199] sm:$0xff]
        %v275 = vld [vmem:[%s199 + $0x8] sm:$0xff]
        %v276 = vld [vmem:[%s199 + $0x10] sm:$0xff]
        %v277 = vld [vmem:[%s199 + $0x18] sm:$0xff]
        %v278 = vld [vmem:[%s199 + $0x20] sm:$0xff]
        %v279 = vld [vmem:[%s199 + $0x28] sm:$0xff]
        %v280 = vld [vmem:[%s238] sm:$0x1]
        %v282 = vperm.slane %v280, 0
        %vm284 = vcmask 392192
        %v286 = vsel %vm284, %v272, 0
        %v289 = vsel %vm284, %v273, 0
        %291 = vmatpush.msra.mxu0 0.0
        %292 = vmatpush.msra.mxu0 0.0
        %293 = vmatpush.msra.mxu0 0.0
        %294 = vmatpush.msra.mxu0 0.0
        %295 = vmatpush.msra.mxu0 0.0
        %296 = vmatpush.msra.mxu0 0.0
        %297 = vmatpush.msra.mxu0 0.0
        %298 = vmatpush.msra.mxu0 0.0
        %299 = vmatpush.msra.mxu0 0.0
        %300 = vmatpush.msra.mxu0 0.0
        %301 = vmatpush.msra.mxu0 %v279
        %302 = vmatpush.msra.mxu0 %v278
        %303 = vmatpush.msra.mxu0 %v277
        %304 = vmatpush.msra.mxu0 %v276
        %305 = vmatpush.msra.mxu0 %v275
        %306 = vmatpush.msra.mxu0 %v274
        %307 = vmatmul.f32.gmra.mxu0 %v286
        %v308 = vpop.f32.mrf.mxu0
        %v309 = vadd.f32 %v282, %v308
        %310 = vmatmul.f32.gmra.mxu0 %v289
        %v311 = vpop.f32.mrf.mxu0
        %v312 = vadd.f32 %v282, %v311
        %313 = vdwg.mxu0
        %v314 = vmax.f32 %v309, 0.0
        %v315 = vmax.f32 %v312, 0.0
        %316 = vst [vmem:[%s230] sm:$0xff] %v314
        %317 = vst [vmem:[%s230 + $0x8] sm:$0xff] %v315
        %s318 = sand.u32 %s120, 1
        %s319 = scalar_lea.sflag [#allocation4], %s318
        %s320 = sand.u32 %s120, 1
        %s321 = smul.addr %s320, 16
        %s322 = scalar_lea.vmem [#allocation5], %s321
        // Predicated region
        $region37: #{tpu_custom_call.1} parent=31 // pred_check
          %p323 = pneg %p130
        $region38: #{tpu_custom_call.1} parent=31 // pred_check_branch
          %325 = sbr.rel (%p323) target = $region40
        $region39: #{tpu_custom_call.1} parent=31 // pred_region
          %s326 = smul.u32 2, %s25
          %328 = vsyncadd %s319, 0
          %s329 = smul.addr %s24, 2
          %s330 = sadd.s32 %s326, %s329
          %s331 = smul.addr %s330, 8
          %s332 = scalar_lea.hbm %s3, %s331
          %s333 = sshll.u32 %s322, 4
          %s334 = int_to_ptr.vmem [resolvable:$true] %s333
          %s335 = sshll.u32 %s332, 4
          %s336 = int_to_ptr.hbm [resolvable:$true] %s335
          %341 = dma.vmem_to_hbm [thread:$0]  %s334, 256, %s336, %s319, 128, 128, 8
        $region40: #{tpu_custom_call.1} parent=31 // pred_fallthru
          _
      $region32: #{tpu_custom_call.1} parent=5 // pred_fallthru
        _
      %p342 = scmp.le.s32.totalorder 2, %s15
      // Predicated region
      $region41: #{tpu_custom_call.1} parent=5 // pred_check
        %p343 = pneg %p342
      $region42: #{tpu_custom_call.1} parent=5 // pred_check_branch
        %345 = sbr.rel (%p343) target = $region44
      $region43: #{tpu_custom_call.1} parent=5 // pred_region
        %s346 = ssub.s32 %s15, 2
        // Predicated region
        $region45: #{tpu_custom_call.1} parent=43 // pred_check
          %p347 = pneg %p136
        $region46: #{tpu_custom_call.1} parent=43 // pred_check_branch
          %349 = sbr.rel (%p347) target = $region48
        $region47: #{tpu_custom_call.1} parent=43 // pred_region
          %s350 = sand.u32 %s121, 1
          %s351 = scalar_lea.sflag [#allocation4], %s350
          %s352 = sand.u32 %s121, 1
          %s353 = smul.addr %s352, 16
          %s354 = scalar_lea.vmem [#allocation5], %s353
          %356 = dma.done %s351, 256
        $region48: #{tpu_custom_call.1} parent=43 // pred_fallthru
          _
      $region44: #{tpu_custom_call.1} parent=5 // pred_fallthru
        _
    $region6: #{tpu_custom_call.1} parent=1 // loop_footer
      %s19 = sadd.s32 1, %s15
    $region7: #{tpu_custom_call.1} parent=1 // loop_footer_branch
      %14 = sbr.rel target = $region3
    $region8: #{tpu_custom_call.1} parent=1 // loop_exit
      _
    %357 = vsyncpa [#allocation3], 1
    %s358 = scalar_lea.sflag [#allocation3], 1
    %359 = vsyncpa %s358, 1
    %360 = vsyncpa [#allocation4], 1
    %s361 = scalar_lea.sflag [#allocation4], 1
    %362 = vsyncpa %s361, 1

</llo_original>
